<compile_context>
chip_gen: v5e
topology: v5e:2x2
jax: 0.10.0
libtpu: 0.0.40
codegen_flags: <defaults>
</compile_context>

<pallas_src>
import math
import functools

import jax
import jax.numpy as jnp
from jax.experimental import pallas as pl
from jax.experimental.pallas import tpu as pltpu


# ----------------------------------------------------------------------------
# Pallas kernel: fused keypoint-MLP (BN folded) + residual add, channel-major
# ----------------------------------------------------------------------------
def _pos_enc_kernel(kxy_ref,                    # (2, TN)  precomputed normalized (kx, ky)
                    p1_ref,                     # (32, 3)   [w1x | w1y | b1]  (BN folded)
                    p2_ref,                     # (64, 33)  [w2 | b2]         (BN folded)
                    p3_ref,                     # (C, 65)   [w3 | b3]
                    x_ref,                      # (B, C, TN) input tile
                    o_ref,                      # (B, C, TN) output tile
                    *, compute_dtype):
    kx = kxy_ref[0:1, :]                        # (1, TN)
    ky = kxy_ref[1:2, :]                        # (1, TN)

    # Layer 1: Conv1d(2->32, k=1) + folded BN + ReLU.  K=2 -> two VPU broadcast FMAs.
    w1x = p1_ref[:, 0:1]
    w1y = p1_ref[:, 1:2]
    b1 = p1_ref[:, 2:3]
    h1 = jnp.maximum(w1x * kx + w1y * ky + b1, 0.0)                               # (32, TN) f32

    # Layer 2: Conv1d(32->64, k=1) + folded BN + ReLU (MXU; bf16 operands on bf16 path).
    w2 = p2_ref[:, 0:32].astype(compute_dtype)
    b2 = p2_ref[:, 32:33]
    h2 = jnp.dot(w2, h1.astype(compute_dtype),
                 preferred_element_type=jnp.float32) + b2
    h2 = jnp.maximum(h2, 0.0)                                                     # (64, TN) f32

    # Layer 3: Conv1d(64->d_model, k=1); bias is zero-initialized in the module.
    w3 = p3_ref[:, 0:64].astype(compute_dtype)
    b3 = p3_ref[:, 64:65]
    pe = jnp.dot(w3, h2.astype(compute_dtype),
                 preferred_element_type=jnp.float32) + b3                         # (C, TN) f32

    # Residual add; pe is batch-invariant and broadcasts over the leading B dim.
    # Add in the output dtype (bf16 on the bf16 path: native VALU on v6e/v7x).
    o_ref[...] = (x_ref[...] + pe[None].astype(o_ref.dtype)).astype(o_ref.dtype)


# ----------------------------------------------------------------------------
# Wrapper helpers
# ----------------------------------------------------------------------------
def _fold_and_pack(params):
    """Fold BatchNorm scale/shift into the conv weights/biases (eval semantics) and pack
    each layer's weight + bias into a single [W | b] array (fewer tiny operand DMAs)."""
    (w1, b1, s1, t1, w2, b2, s2, t2, w3, b3) = params
    w1f = w1 * s1[:, None]                      # (32, 2)
    b1f = (b1 * s1 + t1)[:, None]               # (32, 1)
    w2f = w2 * s2[:, None]                      # (64, 32)
    b2f = (b2 * s2 + t2)[:, None]               # (64, 1)
    p1 = jnp.concatenate([w1f, b1f], axis=1)            # (32, 3)
    p2 = jnp.concatenate([w2f, b2f], axis=1)            # (64, 33)
    p3 = jnp.concatenate([w3, b3[:, None]], axis=1)     # (C, 65)
    return p1, p2, p3


def _keypoint_xy(H, W, n_pad):
    """Normalized keypoint coordinates, lane-dense (2, n_pad) f32.  Matches the module:
    0-based (x, y) grid, centered by (W/2, H/2), scaled by 0.7 * max(W, H)."""
    rows = jax.lax.broadcasted_iota(jnp.float32, (H, W), 0).reshape(-1)   # y
    cols = jax.lax.broadcasted_iota(jnp.float32, (H, W), 1).reshape(-1)   # x
    inv_scale = 1.0 / (0.7 * float(max(H, W)))
    kx = (cols - 0.5 * W) * inv_scale
    ky = (rows - 0.5 * H) * inv_scale
    kxy = jnp.stack([kx, ky], axis=0)                                     # (2, N)
    if n_pad > H * W:
        kxy = jnp.pad(kxy, ((0, 0), (0, n_pad - H * W)))
    return kxy


def _vmem_capacity_bytes():
    try:
        cap = int(getattr(pltpu.get_tpu_info(), "vmem_capacity_bytes"))
        if cap > 0:
            return cap
    except Exception:
        pass
    return 64 * 1024 * 1024        # conservative fallback (v7x per-TC VMEM)


def _per_lane_vmem_bytes(B, C, itemsize):
    """VMEM bytes needed per lane of tile_n (buffers + in-kernel intermediates)."""
    b = 4 * B * C * itemsize       # x in + out tiles, each double-buffered
    b += 2 * 8 * 4                 # kxy tile (2 rows padded to 8 sublanes), double-buffered
    b += (32 + 64 + C) * 4         # h1 / h2 / pe f32 intermediates
    b += B * C * 4                 # residual-add temporary (worst case f32)
    return b


def _pick_tile_n(n_pad, per_lane_bytes, budget_bytes):
    """Largest multiple-of-128 divisor of n_pad within the VMEM budget, preferring an even
    grid-step count (balances v7x's 2 TensorCores) and >= 2 steps (pipelining)."""
    max_tile = max(128, budget_bytes // max(per_lane_bytes, 1))
    max_tile = min(max_tile, n_pad)
    cands = [t for t in range(128, max_tile + 1, 128) if n_pad % t == 0]
    if not cands:
        return 128
    even = [t for t in cands if (n_pad // t) % 2 == 0]
    if even:
        return max(even)
    multi = [t for t in cands if n_pad // t >= 2]
    if multi:
        return max(multi)
    return max(cands)


# ----------------------------------------------------------------------------
# Wrapper
# ----------------------------------------------------------------------------
def position_encoding_superglue(x_nchw, params, *, tile_n=None):
    """x_nchw: (B, C=d_model, H, W). Returns same shape/dtype."""
    B, C, H, W = x_nchw.shape
    N = H * W
    N_pad = max(128, ((N + 127) // 128) * 128)

    x_bcn = x_nchw.reshape(B, C, N)             # free reshape: no transpose needed
    if N_pad != N:
        x_bcn = jnp.pad(x_bcn, ((0, 0), (0, 0), (0, N_pad - N)))

    p1, p2, p3 = _fold_and_pack(params)
    assert p3.shape[0] == C

    kxy = _keypoint_xy(H, W, N_pad)             # (2, N_pad)

    itemsize = jnp.dtype(x_bcn.dtype).itemsize
    cap = _vmem_capacity_bytes()
    per_lane = _per_lane_vmem_bytes(B, C, itemsize)
    fixed = 2 * 4 * 128 * (32 + 64 + C) + (1 << 20)     # padded param double-buffers + slack
    budget = max(int(0.55 * cap) - fixed, 128 * per_lane)
    if tile_n is None:
        tile_n = _pick_tile_n(N_pad, per_lane, budget)
    assert N_pad % tile_n == 0 and tile_n % 128 == 0

    vmem_need = per_lane * tile_n + fixed
    vmem_limit = int(min(0.9 * cap, max(1.25 * vmem_need, 32 << 20)))

    # bf16 inputs -> bf16 MXU operands + bf16 residual add (f32 accumulation kept).
    compute_dtype = jnp.bfloat16 if x_bcn.dtype == jnp.bfloat16 else jnp.float32
    kernel = functools.partial(_pos_enc_kernel, compute_dtype=compute_dtype)

    def _full(a):   # small parameter arrays: whole-array block, same block every step
        return pl.BlockSpec(a.shape, lambda n: (0,) * a.ndim)

    flops = 2 * N_pad * (2 * 32 + 32 * 64 + 64 * C) + B * C * N_pad
    bytes_accessed = (2 * B * C * N_pad * itemsize
                      + 2 * N_pad * 4
                      + (32 * 3 + 64 * 33 + C * 65) * 4)

    out = pl.pallas_call(
        kernel,
        out_shape=jax.ShapeDtypeStruct((B, C, N_pad), x_bcn.dtype),
        grid_spec=pltpu.PrefetchScalarGridSpec(
            num_scalar_prefetch=0,
            grid=(N_pad // tile_n,),
            in_specs=[
                pl.BlockSpec((2, tile_n), lambda n: (0, n)),       # kxy
                _full(p1), _full(p2), _full(p3),
                pl.BlockSpec((B, C, tile_n), lambda n: (0, 0, n)),  # x
            ],
            out_specs=pl.BlockSpec((B, C, tile_n), lambda n: (0, 0, n)),
        ),
        compiler_params=pltpu.CompilerParams(
            dimension_semantics=("parallel",),
            vmem_limit_bytes=vmem_limit),
        cost_estimate=pl.CostEstimate(flops=flops, transcendentals=0,
                                      bytes_accessed=bytes_accessed),
        input_output_aliases={4: 0},            # out aliases x (same shape/dtype)
    )(kxy, p1, p2, p3, x_bcn)

    if N_pad != N:
        out = out[:, :, :N]
    return out.reshape(B, C, H, W)


# ----------------------------------------------------------------------------
# Deterministic parameter construction (synthetic — matches module shapes)
# Weights stored PyTorch-style (out_channels, in_channels); biases (out_channels,)
# ----------------------------------------------------------------------------
def make_params(d_model, key):
    dims = [2, 32, 64, d_model]
    keys = jax.random.split(key, 16)
    ki = iter(range(16))

    def conv_w(cin, cout):
        bound = 1.0 / math.sqrt(cin)
        return jax.random.uniform(keys[next(ki)], (cout, cin), jnp.float32, -bound, bound)

    def conv_b(cin, cout):
        bound = 1.0 / math.sqrt(cin)
        return jax.random.uniform(keys[next(ki)], (cout,), jnp.float32, -bound, bound)

    w1, b1 = conv_w(dims[0], dims[1]), conv_b(dims[0], dims[1])
    w2, b2 = conv_w(dims[1], dims[2]), conv_b(dims[1], dims[2])
    w3 = conv_w(dims[2], dims[3])
    b3 = jnp.zeros((dims[3],), jnp.float32)     # nn.init.constant_(last bias, 0.0)

    # BatchNorm1d folded to per-channel scale/shift (eval-mode semantics).
    # TODO(synk): PyTorch default .train() BN uses per-batch statistics; here we use
    # deterministic running-stat (eval) semantics folded into scale/shift.
    eps = 1e-5

    def bn_fold(c):
        gamma = 1.0 + 0.1 * jax.random.normal(keys[next(ki)], (c,), jnp.float32)
        beta = 0.1 * jax.random.normal(keys[next(ki)], (c,), jnp.float32)
        mean = 0.1 * jax.random.normal(keys[next(ki)], (c,), jnp.float32)
        var = jnp.abs(1.0 + 0.1 * jax.random.normal(keys[next(ki)], (c,), jnp.float32))
        scale = gamma / jnp.sqrt(var + eps)
        shift = beta - mean * scale
        return scale, shift

    s1, t1 = bn_fold(dims[1])
    s2, t2 = bn_fold(dims[2])
    return (w1, b1, s1, t1, w2, b2, s2, t2, w3, b3)


# ----------------------------------------------------------------------------
# Pure-JAX reference (mirrors the PyTorch forward with folded-eval BN)
# ----------------------------------------------------------------------------
def reference(x_nchw, params):
    B, C, H, W = x_nchw.shape
    rows = jax.lax.broadcasted_iota(jnp.float32, (H, W), 0)     # y_position - 1
    cols = jax.lax.broadcasted_iota(jnp.float32, (H, W), 1)     # x_position - 1
    kpts = jnp.stack([cols.reshape(-1), rows.reshape(-1)], axis=-1)   # (N, 2) = (x, y)
    size = jnp.array([float(W), float(H)], jnp.float32)
    kpts_n = (kpts - size / 2.0) / (jnp.max(size) * 0.7)

    (w1, b1, s1, t1, w2, b2, s2, t2, w3, b3) = params
    h = kpts_n[:, 0:1] * w1[:, 0] + kpts_n[:, 1:2] * w1[:, 1] + b1     # (N, 32)
    h = jnp.maximum(h * s1 + t1, 0.0)
    h = jnp.maximum((h @ w2.T + b2) * s2 + t2, 0.0)                    # (N, 64)
    pe = h @ w3.T + b3                                                 # (N, C)
    return x_nchw + pe.T.reshape(1, C, H, W)


if __name__ == "__main__":
    key = jax.random.PRNGKey(0)
    k_x, k_p, k_x2 = jax.random.split(key, 3)

    # --- main f32 test ---
    B, d_model, H, W = 2, 32, 16, 16
    x = jax.random.normal(k_x, (B, d_model, H, W), jnp.float32)   # NCHW like PyTorch
    params = make_params(d_model, k_p)

    out = jax.block_until_ready(position_encoding_superglue(x, params))
    ref = reference(x, params)
    assert out.shape == x.shape and out.dtype == x.dtype
    # Tolerance accounts for MXU default-precision / summation-order differences.
    assert jnp.allclose(out, ref, atol=1e-3, rtol=1e-3), "f32 mismatch vs reference"

    # --- bf16 path (bf16 MXU dots + bf16 residual add) ---
    x_bf16 = x.astype(jnp.bfloat16)
    out_bf16 = jax.block_until_ready(position_encoding_superglue(x_bf16, params))
    assert out_bf16.dtype == jnp.bfloat16
    assert jnp.allclose(out_bf16.astype(jnp.float32), ref, atol=3e-1), "bf16 mismatch"

    # --- N not a multiple of 128 (pad-and-slice path) ---
    B2, C2, H2, W2 = 1, 64, 10, 12
    x2 = jax.random.normal(k_x2, (B2, C2, H2, W2), jnp.float32)
    params2 = make_params(C2, jax.random.PRNGKey(1))
    out2 = jax.block_until_ready(position_encoding_superglue(x2, params2))
    ref2 = reference(x2, params2)
    assert jnp.allclose(out2, ref2, atol=1e-3, rtol=1e-3), "padded-N mismatch"

    print("KERNEL_OK")
</pallas_src>

<mosaic_0001>
module attributes {stable_mosaic.version = 11 : i64} {
  func.func @_pos_enc_kernel(%arg0: i32, %arg1: memref<2x128xf32, #tpu.memory_space<vmem>>, %arg2: memref<32x3xf32, #tpu.memory_space<vmem>>, %arg3: memref<64x33xf32, #tpu.memory_space<vmem>>, %arg4: memref<32x65xf32, #tpu.memory_space<vmem>>, %arg5: memref<2x32x128xf32, #tpu.memory_space<vmem>>, %arg6: memref<2x32x128xf32, #tpu.memory_space<vmem>>) attributes {dimension_semantics = [#tpu.dimension_semantics<parallel>], iteration_bounds = array<i64: 2>, scalar_prefetch = 0 : i64, scratch_operands = 0 : i64, tpu.core_type = #tpu.core_type<tc>, window_params = [{transform_indices = @transform_0, window_bounds = array<i64: 2, 128>}, {pipeline_mode = #tpu.pipeline_mode<synchronous>, transform_indices = @transform_1, window_bounds = array<i64: 32, 3>}, {pipeline_mode = #tpu.pipeline_mode<synchronous>, transform_indices = @transform_2, window_bounds = array<i64: 64, 33>}, {pipeline_mode = #tpu.pipeline_mode<synchronous>, transform_indices = @transform_3, window_bounds = array<i64: 32, 65>}, {transform_indices = @transform_4, window_bounds = array<i64: 2, 32, 128>}, {transform_indices = @transform_5, window_bounds = array<i64: 2, 32, 128>}]} {
    %c0 = arith.constant 0 : index
    %c0_0 = arith.constant 0 : index
    %0 = vector.load %arg1[%c0, %c0_0] : memref<2x128xf32, #tpu.memory_space<vmem>>, vector<1x128xf32>
    %c1 = arith.constant 1 : index
    %c0_1 = arith.constant 0 : index
    %1 = vector.load %arg1[%c1, %c0_1] : memref<2x128xf32, #tpu.memory_space<vmem>>, vector<1x128xf32>
    %c0_2 = arith.constant 0 : index
    %c0_3 = arith.constant 0 : index
    %2 = vector.load %arg2[%c0_2, %c0_3] : memref<32x3xf32, #tpu.memory_space<vmem>>, vector<32x1xf32>
    %c0_4 = arith.constant 0 : index
    %c1_5 = arith.constant 1 : index
    %3 = vector.load %arg2[%c0_4, %c1_5] : memref<32x3xf32, #tpu.memory_space<vmem>>, vector<32x1xf32>
    %c0_6 = arith.constant 0 : index
    %c2 = arith.constant 2 : index
    %4 = vector.load %arg2[%c0_6, %c2] : memref<32x3xf32, #tpu.memory_space<vmem>>, vector<32x1xf32>
    %5 = vector.broadcast %2 : vector<32x1xf32> to vector<32x128xf32>
    %6 = vector.broadcast %0 : vector<1x128xf32> to vector<32x128xf32>
    %7 = arith.mulf %5, %6 : vector<32x128xf32>
    %8 = vector.broadcast %3 : vector<32x1xf32> to vector<32x128xf32>
    %9 = vector.broadcast %1 : vector<1x128xf32> to vector<32x128xf32>
    %10 = arith.mulf %8, %9 : vector<32x128xf32>
    %11 = arith.addf %7, %10 : vector<32x128xf32>
    %12 = vector.broadcast %4 : vector<32x1xf32> to vector<32x128xf32>
    %13 = arith.addf %11, %12 : vector<32x128xf32>
    %cst = arith.constant 0.000000e+00 : f32
    %14 = vector.broadcast %cst : f32 to vector<32x128xf32>
    %15 = arith.maximumf %13, %14 : vector<32x128xf32>
    %c0_7 = arith.constant 0 : index
    %c0_8 = arith.constant 0 : index
    %16 = vector.load %arg3[%c0_7, %c0_8] : memref<64x33xf32, #tpu.memory_space<vmem>>, vector<64x32xf32>
    %c0_9 = arith.constant 0 : index
    %c32 = arith.constant 32 : index
    %17 = vector.load %arg3[%c0_9, %c32] : memref<64x33xf32, #tpu.memory_space<vmem>>, vector<64x1xf32>
    %cst_10 = arith.constant dense<0.000000e+00> : vector<64x128xf32>
    %18 = tpu.matmul %16, %15, %cst_10 {dimension_numbers = #tpu.dot_dimension_numbers<[1], [0], [0], [1], [0, 0, 1, 1], [], []>} : vector<64x32xf32>, vector<32x128xf32>, vector<64x128xf32> -> vector<64x128xf32>
    %19 = vector.broadcast %17 : vector<64x1xf32> to vector<64x128xf32>
    %20 = arith.addf %18, %19 : vector<64x128xf32>
    %cst_11 = arith.constant 0.000000e+00 : f32
    %21 = vector.broadcast %cst_11 : f32 to vector<64x128xf32>
    %22 = arith.maximumf %20, %21 : vector<64x128xf32>
    %c0_12 = arith.constant 0 : index
    %c0_13 = arith.constant 0 : index
    %23 = vector.load %arg4[%c0_12, %c0_13] : memref<32x65xf32, #tpu.memory_space<vmem>>, vector<32x64xf32>
    %c0_14 = arith.constant 0 : index
    %c64 = arith.constant 64 : index
    %24 = vector.load %arg4[%c0_14, %c64] : memref<32x65xf32, #tpu.memory_space<vmem>>, vector<32x1xf32>
    %cst_15 = arith.constant dense<0.000000e+00> : vector<32x128xf32>
    %25 = tpu.matmul %23, %22, %cst_15 {dimension_numbers = #tpu.dot_dimension_numbers<[1], [0], [0], [1], [0, 0, 1, 1], [], []>} : vector<32x64xf32>, vector<64x128xf32>, vector<32x128xf32> -> vector<32x128xf32>
    %26 = vector.broadcast %24 : vector<32x1xf32> to vector<32x128xf32>
    %27 = arith.addf %25, %26 : vector<32x128xf32>
    %c0_16 = arith.constant 0 : index
    %c0_17 = arith.constant 0 : index
    %c0_18 = arith.constant 0 : index
    %28 = vector.load %arg5[%c0_16, %c0_17, %c0_18] : memref<2x32x128xf32, #tpu.memory_space<vmem>>, vector<2x32x128xf32>
    %29 = vector.shape_cast %27 : vector<32x128xf32> to vector<1x32x128xf32>
    %30 = vector.broadcast %29 : vector<1x32x128xf32> to vector<2x32x128xf32>
    %31 = arith.addf %28, %30 : vector<2x32x128xf32>
    %c0_19 = arith.constant 0 : index
    %c0_20 = arith.constant 0 : index
    %c0_21 = arith.constant 0 : index
    %32 = vector.load %arg6[%c0_19, %c0_20, %c0_21] : memref<2x32x128xf32, #tpu.memory_space<vmem>>, vector<2x32x128xf32>
    tpu.vector_store %arg6[%c0_19, %c0_20, %c0_21], %31 {strides = array<i32>} : memref<2x32x128xf32, #tpu.memory_space<vmem>>, vector<2x32x128xf32>,
    return
  }
  func.func @transform_0(%arg0: i32) -> (i32, i32) {
    %c0_i32 = arith.constant 0 : i32
    %c0_i32_0 = arith.constant 0 : i32
    return %c0_i32, %arg0 : i32, i32
  }
  func.func @transform_1(%arg0: i32) -> (i32, i32) {
    %c0_i32 = arith.constant 0 : i32
    %c0_i32_0 = arith.constant 0 : i32
    %c0_i32_1 = arith.constant 0 : i32
    return %c0_i32, %c0_i32_0 : i32, i32
  }
  func.func @transform_2(%arg0: i32) -> (i32, i32) {
    %c0_i32 = arith.constant 0 : i32
    %c0_i32_0 = arith.constant 0 : i32
    %c0_i32_1 = arith.constant 0 : i32
    return %c0_i32, %c0_i32_0 : i32, i32
  }
  func.func @transform_3(%arg0: i32) -> (i32, i32) {
    %c0_i32 = arith.constant 0 : i32
    %c0_i32_0 = arith.constant 0 : i32
    %c0_i32_1 = arith.constant 0 : i32
    return %c0_i32, %c0_i32_0 : i32, i32
  }
  func.func @transform_4(%arg0: i32) -> (i32, i32, i32) {
    %c0_i32 = arith.constant 0 : i32
    %c0_i32_0 = arith.constant 0 : i32
    %c0_i32_1 = arith.constant 0 : i32
    return %c0_i32, %c0_i32_0, %arg0 : i32, i32, i32
  }
  func.func @transform_5(%arg0: i32) -> (i32, i32, i32) {
    %c0_i32 = arith.constant 0 : i32
    %c0_i32_0 = arith.constant 0 : i32
    %c0_i32_1 = arith.constant 0 : i32
    return %c0_i32, %c0_i32_0, %arg0 : i32, i32, i32
  }
}

</mosaic_0001>

<llo_original>
// kernel: tpu_custom_call.1
$region0: #{tpu_custom_call.1}
  #allocation0 [shape = 'u32[]', space=smem, size = 0x4, offset = 0x4, fixed_abs, tag = 'smem constant byte address 0x4 - core index']
  #allocation1 [shape = 'u32[72,128]{1,0:T(1,128)}', space=vmem, size = 0x9000, scoped, tag = 'internal scratch']
  %s0 = inlined_call_operand.vmem [shape: f32[2,256], index: 0, kind: input, shape index: {}]
  %s1 = inlined_call_operand.vmem [shape: f32[32,3], index: 1, kind: input, shape index: {}]
  %s2 = inlined_call_operand.vmem [shape: f32[64,33], index: 2, kind: input, shape index: {}]
  %s3 = inlined_call_operand.vmem [shape: f32[32,65], index: 3, kind: input, shape index: {}]
  %s4 = inlined_call_operand.hbm [shape: f32[2,32,256], index: 4, kind: input, shape index: {}, may-alias: {4,5}]
  %s5 = inlined_call_operand.hbm [shape: f32[2,32,256], index: 5, kind: output, shape index: {}, may-alias: {4,5}]
  %s6 = sld [smem:[#allocation0]]
  $region57: #{tpu_custom_call.1} parent=0
    _
  %s8 = ssub.s32 1, %s6
  %s9 = scalar_select 0, %s8, %s6
  $region1: #{tpu_custom_call.1} parent=0
    #allocation2 [shape = 'u8[65536]{0}', space=vmem, size = 0x10000, scoped, tag = 'input window, operand 4']
    #allocation3 [shape = 's32[2]{0}', space=sflag, size = 0x8, scoped, tag = 'scoped memory for tpu_custom_call.1']
    #allocation4 [shape = 's32[2]{0}', space=sflag, size = 0x8, scoped, tag = 'scoped memory for tpu_custom_call.1']
    #allocation5 [shape = 'u8[65536]{0}', space=vmem, size = 0x10000, scoped, tag = 'output window, operand 0']
    %10 = vsyncpa [#allocation3], 0
    %s11 = scalar_lea.sflag [#allocation3], 1
    %12 = vsyncpa %s11, 0
    %13 = vsyncpa [#allocation4], 0
    %s14 = scalar_lea.sflag [#allocation4], 1
    %15 = vsyncpa %s14, 0
    loop: start=0, step=1, limit=4
    $region2: #{tpu_custom_call.1} parent=1 // loop_pre_header
      _
    $region3: #{tpu_custom_call.1} parent=1 // loop_header
      %s17 = sphi 0, %s21
      %p18 = scmp.ge.s32.totalorder %s17, 4
      %s27 = sphi 0, %s29
      %s30 = sphi 0, %s27
      %s31 = sphi 0, %s30
      %s47 = sphi 0, %s31
      %s51 = sphi 0, %s51
      %s53 = sphi 0, %s51
      %s54 = sphi 0, %s53
      %s68 = sphi 0, %s54
      %s72 = sphi 0, %s72
      %s74 = sphi 0, %s72
      %s75 = sphi 0, %s74
      %s89 = sphi 0, %s75
      %s93 = sphi 0, %s93
      %s95 = sphi 0, %s93
      %s96 = sphi 0, %s95
      %s110 = sphi 0, %s96
      %s116 = sphi 0, %s118
      %s119 = sphi 0, %s116
      %s120 = sphi 0, %s119
      %s136 = sphi 0, %s120
      %s142 = sphi 0, %s144
      %s145 = sphi 0, %s142
      %s146 = sphi 0, %s145
      %s162 = sphi 0, %s146
    $region4: #{tpu_custom_call.1} parent=1 // loop_header_branch
      %20 = sbr.rel (%p18) target = $region8
    $region5: #{tpu_custom_call.1} parent=1 // loop_body
      %s22 = ssub.s32 %s17, 1
      %s23 = ssub.s32 %s17, 2
      %s24 = sadd.s32 %s17, 1
      %s25 = ssub.s32 %s17, %s24
      %p26 = scmp.eq.s32.totalorder %s25, 0
      %s28 = sadd.s32 %s27, 1
      %s29 = scalar_select %p26, %s27, %s28
      %p32 = pneg %p26
      %p33 = scmp.eq.s32.totalorder %s17, 1
      %p34 = por %p32, %p33
      %p35 = scmp.ne.s32.totalorder %s27, %s30
      %p36 = scmp.eq.s32.totalorder %s17, 0
      %p37 = por %p35, %p36
      %p38 = scmp.ne.s32.totalorder %s27, %s30
      %p39 = scmp.eq.s32.totalorder %s22, 1
      %p40 = por %p38, %p39
      %p41 = scmp.ne.s32.totalorder %s30, %s31
      %p42 = scmp.eq.s32.totalorder %s22, 0
      %p43 = por %p41, %p42
      %p44 = scmp.ne.s32.totalorder %s30, %s31
      %p45 = scmp.eq.s32.totalorder %s23, 1
      %p46 = por %p44, %p45
      %p48 = scmp.ne.s32.totalorder %s31, %s47
      %p49 = scmp.eq.s32.totalorder %s23, 0
      %p50 = por %p48, %p49
      %s52 = sadd.s32 %s51, 1
      %p55 = scmp.eq.s32.totalorder %s17, 1
      %p56 = scmp.ne.s32.totalorder %s51, %s53
      %p57 = scmp.eq.s32.totalorder %s17, 0
      %p58 = por %p56, %p57
      %p59 = scmp.ne.s32.totalorder %s51, %s53
      %p60 = scmp.eq.s32.totalorder %s22, 1
      %p61 = por %p59, %p60
      %p62 = scmp.ne.s32.totalorder %s53, %s54
      %p63 = scmp.eq.s32.totalorder %s22, 0
      %p64 = por %p62, %p63
      %p65 = scmp.ne.s32.totalorder %s53, %s54
      %p66 = scmp.eq.s32.totalorder %s23, 1
      %p67 = por %p65, %p66
      %p69 = scmp.ne.s32.totalorder %s54, %s68
      %p70 = scmp.eq.s32.totalorder %s23, 0
      %p71 = por %p69, %p70
      %s73 = sadd.s32 %s72, 1
      %p76 = scmp.eq.s32.totalorder %s17, 1
      %p77 = scmp.ne.s32.totalorder %s72, %s74
      %p78 = scmp.eq.s32.totalorder %s17, 0
      %p79 = por %p77, %p78
      %p80 = scmp.ne.s32.totalorder %s72, %s74
      %p81 = scmp.eq.s32.totalorder %s22, 1
      %p82 = por %p80, %p81
      %p83 = scmp.ne.s32.totalorder %s74, %s75
      %p84 = scmp.eq.s32.totalorder %s22, 0
      %p85 = por %p83, %p84
      %p86 = scmp.ne.s32.totalorder %s74, %s75
      %p87 = scmp.eq.s32.totalorder %s23, 1
      %p88 = por %p86, %p87
      %p90 = scmp.ne.s32.totalorder %s75, %s89
      %p91 = scmp.eq.s32.totalorder %s23, 0
      %p92 = por %p90, %p91
      %s94 = sadd.s32 %s93, 1
      %p97 = scmp.eq.s32.totalorder %s17, 1
      %p98 = scmp.ne.s32.totalorder %s93, %s95
      %p99 = scmp.eq.s32.totalorder %s17, 0
      %p100 = por %p98, %p99
      %p101 = scmp.ne.s32.totalorder %s93, %s95
      %p102 = scmp.eq.s32.totalorder %s22, 1
      %p103 = por %p101, %p102
      %p104 = scmp.ne.s32.totalorder %s95, %s96
      %p105 = scmp.eq.s32.totalorder %s22, 0
      %p106 = por %p104, %p105
      %p107 = scmp.ne.s32.totalorder %s95, %s96
      %p108 = scmp.eq.s32.totalorder %s23, 1
      %p109 = por %p107, %p108
      %p111 = scmp.ne.s32.totalorder %s96, %s110
      %p112 = scmp.eq.s32.totalorder %s23, 0
      %p113 = por %p111, %p112
      %s114 = ssub.s32 %s17, %s24
      %p115 = scmp.eq.s32.totalorder %s114, 0
      %s117 = sadd.s32 %s116, 1
      %s118 = scalar_select %p115, %s116, %s117
      %p121 = pneg %p115
      %p122 = scmp.eq.s32.totalorder %s17, 1
      %p123 = por %p121, %p122
      %p124 = scmp.ne.s32.totalorder %s116, %s119
      %p125 = scmp.eq.s32.totalorder %s17, 0
      %p126 = por %p124, %p125
      %p127 = scmp.ne.s32.totalorder %s116, %s119
      %p128 = scmp.eq.s32.totalorder %s22, 1
      %p129 = por %p127, %p128
      %p130 = scmp.ne.s32.totalorder %s119, %s120
      %p131 = scmp.eq.s32.totalorder %s22, 0
      %p132 = por %p130, %p131
      %p133 = scmp.ne.s32.totalorder %s119, %s120
      %p134 = scmp.eq.s32.totalorder %s23, 1
      %p135 = por %p133, %p134
      %p137 = scmp.ne.s32.totalorder %s120, %s136
      %p138 = scmp.eq.s32.totalorder %s23, 0
      %p139 = por %p137, %p138
      %s140 = ssub.s32 %s17, %s24
      %p141 = scmp.eq.s32.totalorder %s140, 0
      %s143 = sadd.s32 %s142, 1
      %s144 = scalar_select %p141, %s142, %s143
      %p147 = pneg %p141
      %p148 = scmp.eq.s32.totalorder %s17, 1
      %p149 = por %p147, %p148
      %p150 = scmp.ne.s32.totalorder %s142, %s145
      %p151 = scmp.eq.s32.totalorder %s17, 0
      %p152 = por %p150, %p151
      %p153 = scmp.ne.s32.totalorder %s142, %s145
      %p154 = scmp.eq.s32.totalorder %s22, 1
      %p155 = por %p153, %p154
      %p156 = scmp.ne.s32.totalorder %s145, %s146
      %p157 = scmp.eq.s32.totalorder %s22, 0
      %p158 = por %p156, %p157
      %p159 = scmp.ne.s32.totalorder %s145, %s146
      %p160 = scmp.eq.s32.totalorder %s23, 1
      %p161 = por %p159, %p160
      %p163 = scmp.ne.s32.totalorder %s146, %s162
      %p164 = scmp.eq.s32.totalorder %s23, 0
      %p165 = por %p163, %p164
      %p166 = scmp.le.s32.totalorder 1, %s17
      %p167 = scmp.lt.s32.totalorder %s17, 3
      %p168 = pnand %p166, %p167
      %p169 = pneg %p168
      // Predicated region
      $region9: #{tpu_custom_call.1} parent=5 // pred_check
        _
      $region10: #{tpu_custom_call.1} parent=5 // pred_check_branch
        %171 = sbr.rel (%p168) target = $region12
      $region11: #{tpu_custom_call.1} parent=5 // pred_region
        %s172 = ssub.s32 %s17, 1
        // Predicated region
        $region13: #{tpu_custom_call.1} parent=11 // pred_check
          %p173 = pneg %p64
        $region14: #{tpu_custom_call.1} parent=11 // pred_check_branch
          %175 = sbr.rel (%p173) target = $region16
        $region15: #{tpu_custom_call.1} parent=11 // pred_region
          _
        $region16: #{tpu_custom_call.1} parent=11 // pred_fallthru
          _
        // Predicated region
        $region17: #{tpu_custom_call.1} parent=11 // pred_check
          %p176 = pneg %p85
        $region18: #{tpu_custom_call.1} parent=11 // pred_check_branch
          %178 = sbr.rel (%p176) target = $region20
        $region19: #{tpu_custom_call.1} parent=11 // pred_region
          _
        $region20: #{tpu_custom_call.1} parent=11 // pred_fallthru
          _
        // Predicated region
        $region21: #{tpu_custom_call.1} parent=11 // pred_check
          %p179 = pneg %p106
        $region22: #{tpu_custom_call.1} parent=11 // pred_check_branch
          %181 = sbr.rel (%p179) target = $region24
        $region23: #{tpu_custom_call.1} parent=11 // pred_region
          _
        $region24: #{tpu_custom_call.1} parent=11 // pred_fallthru
          _
      $region12: #{tpu_custom_call.1} parent=5 // pred_fallthru
        _
      %p182 = scmp.lt.s32.totalorder %s17, 2
      // Predicated region
      $region25: #{tpu_custom_call.1} parent=5 // pred_check
        %p183 = pneg %p182
      $region26: #{tpu_custom_call.1} parent=5 // pred_check_branch
        %185 = sbr.rel (%p183) target = $region28
      $region27: #{tpu_custom_call.1} parent=5 // pred_region
        // Predicated region
        $region29: #{tpu_custom_call.1} parent=27 // pred_check
          %p186 = pneg %p37
        $region30: #{tpu_custom_call.1} parent=27 // pred_check_branch
          %188 = sbr.rel (%p186) target = $region32
        $region31: #{tpu_custom_call.1} parent=27 // pred_region
          %p189 = scmp.lt.s32.totalorder %s17, 1
          %s190 = scalar_select %p189, %s17, 1
          %s191 = smul.addr %s190, 2
          %s192 = scalar_lea.vmem %s0, %s191
        $region32: #{tpu_custom_call.1} parent=27 // pred_fallthru
          _
        // Predicated region
        $region33: #{tpu_custom_call.1} parent=27 // pred_check
          %p193 = pneg %p126
        $region34: #{tpu_custom_call.1} parent=27 // pred_check_branch
          %195 = sbr.rel (%p193) target = $region36
        $region35: #{tpu_custom_call.1} parent=27 // pred_region
          %s196 = sand.u32 %s116, 1
          %s197 = scalar_lea.sflag [#allocation3], %s196
          %s198 = sand.u32 %s116, 1
          %s199 = smul.addr %s198, 64
          %s200 = scalar_lea.vmem [#allocation2], %s199
          %202 = vsyncadd %s197, 0
          %s203 = smul.addr %s17, 8
          %s204 = scalar_lea.hbm %s4, %s203
          %s205 = sshll.u32 %s204, 4
          %s206 = int_to_ptr.hbm [resolvable:$true] %s205
          %s207 = sshll.u32 %s200, 4
          %s208 = int_to_ptr.vmem [resolvable:$true] %s207
          %213 = dma.hbm_to_vmem [thread:$0]  %s206, 1024, %s208, %s197, 256, 128, 8
        $region36: #{tpu_custom_call.1} parent=27 // pred_fallthru
          _
      $region28: #{tpu_custom_call.1} parent=5 // pred_fallthru
        _
      %p214 = scmp.le.s32.totalorder 1, %s17
      %p215 = scmp.lt.s32.totalorder %s17, 3
      %p216 = pnand %p214, %p215
      %p217 = pneg %p216
      // Predicated region
      $region37: #{tpu_custom_call.1} parent=5 // pred_check
        _
      $region38: #{tpu_custom_call.1} parent=5 // pred_check_branch
        %219 = sbr.rel (%p216) target = $region40
      $region39: #{tpu_custom_call.1} parent=5 // pred_region
        %s220 = ssub.s32 %s17, 1
        %s221 = sand.u32 %s119, 1
        %s222 = scalar_lea.sflag [#allocation3], %s221
        %s223 = sand.u32 %s119, 1
        %s224 = smul.addr %s223, 64
        %s225 = scalar_lea.vmem [#allocation2], %s224
        // Predicated region
        $region41: #{tpu_custom_call.1} parent=39 // pred_check
          %p226 = pneg %p132
        $region42: #{tpu_custom_call.1} parent=39 // pred_check_branch
          %228 = sbr.rel (%p226) target = $region44
        $region43: #{tpu_custom_call.1} parent=39 // pred_region
          %230 = dma.done %s222, 1024
        $region44: #{tpu_custom_call.1} parent=39 // pred_fallthru
          _
        %p231 = scmp.lt.s32.totalorder %s22, 1
        %s232 = scalar_select %p231, %s22, 1
        %s233 = smul.addr %s232, 2
        %s234 = scalar_lea.vmem %s0, %s233
        %p235 = pneg %p43
        %p236 = pneg %p40
        %p237 = pneg %p64
        %p238 = pneg %p61
        %p239 = pneg %p85
        %p240 = pneg %p82
        %p241 = pneg %p106
        %p242 = pneg %p103
        %s243 = sand.u32 %s119, 1
        %s244 = scalar_lea.sflag [#allocation3], %s243
        %s245 = sand.u32 %s119, 1
        %s246 = smul.addr %s245, 64
        %s247 = scalar_lea.vmem [#allocation2], %s246
        %p248 = pneg %p132
        %p249 = pneg %p129
        %p250 = pneg %p158
        %p251 = pneg %p155
        %s252 = sand.u32 %s145, 1
        %s253 = scalar_lea.sflag [#allocation4], %s252
        %s254 = sand.u32 %s145, 1
        %s255 = smul.addr %s254, 64
        %s256 = scalar_lea.vmem [#allocation5], %s255
        %p257 = scmp.lt.s32.totalorder %s22, 1
        %s258 = scalar_select %p257, %s22, 1
        %s259 = smul.addr %s258, 2
        %s260 = scalar_lea.vmem %s0, %s259
        %v261 = vld [vmem:[%s260] sm:$0x1]
        %v262 = vld [vmem:[%s260 + $0x1] sm:$0x1]
        %v263 = vld [vmem:[%s1] sm:$0xff]
        %v264 = vld [vmem:[%s1 + $0x8] sm:$0xff]
        %v265 = vld [vmem:[%s1 + $0x10] sm:$0xff]
        %v266 = vld [vmem:[%s1 + $0x18] sm:$0xff]
        %268 = vset.pattern.permute.xlu0 0
        %269 = vperm.xlu0 %268, %v263
        %v270 = vpop.permute.xlu0 %269
        %273 = vset.pattern.permute.xlu0 0
        %274 = vperm.xlu0 %273, %v264
        %v275 = vpop.permute.xlu0 %274
        %278 = vset.pattern.permute.xlu0 0
        %279 = vperm.xlu0 %278, %v265
        %v280 = vpop.permute.xlu0 %279
        %283 = vset.pattern.permute.xlu0 0
        %284 = vperm.xlu0 %283, %v266
        %v285 = vpop.permute.xlu0 %284
        %v287 = vperm.slane %v261, 0
        %v288 = vmul.f32 %v270, %v287
        %v289 = vmul.f32 %v275, %v287
        %v290 = vmul.f32 %v280, %v287
        %v291 = vmul.f32 %v285, %v287
        %292 = vset.pattern.permute.xlu0 1
        %293 = vperm.xlu0 %292, %v263
        %v294 = vpop.permute.xlu0 %293
        %296 = vset.pattern.permute.xlu0 1
        %297 = vperm.xlu0 %296, %v264
        %v298 = vpop.permute.xlu0 %297
        %300 = vset.pattern.permute.xlu0 1
        %301 = vperm.xlu0 %300, %v265
        %v302 = vpop.permute.xlu0 %301
        %304 = vset.pattern.permute.xlu0 1
        %305 = vperm.xlu0 %304, %v266
        %v306 = vpop.permute.xlu0 %305
        %v308 = vperm.slane %v262, 0
        %v309 = vmul.f32 %v294, %v308
        %v310 = vmul.f32 %v298, %v308
        %v311 = vmul.f32 %v302, %v308
        %v312 = vmul.f32 %v306, %v308
        %v313 = vadd.f32 %v288, %v309
        %v314 = vadd.f32 %v289, %v310
        %v315 = vadd.f32 %v290, %v311
        %v316 = vadd.f32 %v291, %v312
        %317 = vset.pattern.permute.xlu0 2
        %318 = vperm.xlu0 %317, %v263
        %v319 = vpop.permute.xlu0 %318
        %321 = vset.pattern.permute.xlu0 2
        %322 = vperm.xlu0 %321, %v264
        %v323 = vpop.permute.xlu0 %322
        %325 = vset.pattern.permute.xlu0 2
        %326 = vperm.xlu0 %325, %v265
        %v327 = vpop.permute.xlu0 %326
        %329 = vset.pattern.permute.xlu0 2
        %330 = vperm.xlu0 %329, %v266
        %v331 = vpop.permute.xlu0 %330
        %v333 = vadd.f32 %v313, %v319
        %v334 = vadd.f32 %v314, %v323
        %v335 = vadd.f32 %v315, %v327
        %v336 = vadd.f32 %v316, %v331
        %v337 = vmax.f32 %v333, 0.0
        %v338 = vmax.f32 %v334, 0.0
        %v339 = vmax.f32 %v335, 0.0
        %v340 = vmax.f32 %v336, 0.0
        %v341 = vld [vmem:[%s2] sm:$0xff]
        %v342 = vld [vmem:[%s2 + $0x8] sm:$0xff]
        %v343 = vld [vmem:[%s2 + $0x10] sm:$0xff]
        %v344 = vld [vmem:[%s2 + $0x18] sm:$0xff]
        %v345 = vld [vmem:[%s2 + $0x20] sm:$0xff]
        %v346 = vld [vmem:[%s2 + $0x28] sm:$0xff]
        %v347 = vld [vmem:[%s2 + $0x30] sm:$0xff]
        %v348 = vld [vmem:[%s2 + $0x38] sm:$0xff]
        %350 = vset.pattern.permute.xlu0 32
        %351 = vperm.xlu0 %350, %v341
        %v352 = vpop.permute.xlu0 %351
        %355 = vset.pattern.permute.xlu0 32
        %356 = vperm.xlu0 %355, %v342
        %v357 = vpop.permute.xlu0 %356
        %360 = vset.pattern.permute.xlu0 32
        %361 = vperm.xlu0 %360, %v343
        %v362 = vpop.permute.xlu0 %361
        %365 = vset.pattern.permute.xlu0 32
        %366 = vperm.xlu0 %365, %v344
        %v367 = vpop.permute.xlu0 %366
        %370 = vset.pattern.permute.xlu0 32
        %371 = vperm.xlu0 %370, %v345
        %v372 = vpop.permute.xlu0 %371
        %375 = vset.pattern.permute.xlu0 32
        %376 = vperm.xlu0 %375, %v346
        %v377 = vpop.permute.xlu0 %376
        %380 = vset.pattern.permute.xlu0 32
        %381 = vperm.xlu0 %380, %v347
        %v382 = vpop.permute.xlu0 %381
        %385 = vset.pattern.permute.xlu0 32
        %386 = vperm.xlu0 %385, %v348
        %v387 = vpop.permute.xlu0 %386
        %vm389 = vcmask 261120
        %v390 = vsel %vm389, %v341, 0
        %v392 = vsel %vm389, %v342, 0
        %v394 = vsel %vm389, %v343, 0
        %v396 = vsel %vm389, %v344, 0
        %v398 = vsel %vm389, %v345, 0
        %v400 = vsel %vm389, %v346, 0
        %v402 = vsel %vm389, %v347, 0
        %v404 = vsel %vm389, %v348, 0
        %406 = vmatpush.msra.mxu0 0.0
        %407 = vmatpush.msra.mxu0 0.0
        %408 = vmatpush.msra.mxu0 0.0
        %409 = vmatpush.msra.mxu0 0.0
        %410 = vmatpush.msra.mxu0 0.0
        %411 = vmatpush.msra.mxu0 0.0
        %412 = vmatpush.msra.mxu0 0.0
        %413 = vmatpush.msra.mxu0 0.0
        %414 = vmatpush.msra.mxu0 0.0
        %415 = vmatpush.msra.mxu0 0.0
        %416 = vmatpush.msra.mxu0 0.0
        %417 = vmatpush.msra.mxu0 0.0
        %418 = vmatpush.msra.mxu0 %v340
        %419 = vmatpush.msra.mxu0 %v339
        %420 = vmatpush.msra.mxu0 %v338
        %421 = vmatpush.msra.mxu0 %v337
        %422 = vmatmul.f32.gmra.mxu0 %v390
        %v423 = vpop.f32.mrf.mxu0
        %v424 = vadd.f32 %v352, %v423
        %425 = vmatmul.f32.gmra.mxu0 %v392
        %v426 = vpop.f32.mrf.mxu0
        %v427 = vadd.f32 %v357, %v426
        %428 = vmatmul.f32.gmra.mxu0 %v394
        %v429 = vpop.f32.mrf.mxu0
        %v430 = vadd.f32 %v362, %v429
        %431 = vmatmul.f32.gmra.mxu0 %v396
        %v432 = vpop.f32.mrf.mxu0
        %v433 = vadd.f32 %v367, %v432
        %434 = vmatmul.f32.gmra.mxu0 %v398
        %v435 = vpop.f32.mrf.mxu0
        %v436 = vadd.f32 %v372, %v435
        %437 = vmatmul.f32.gmra.mxu0 %v400
        %v438 = vpop.f32.mrf.mxu0
        %v439 = vadd.f32 %v377, %v438
        %440 = vmatmul.f32.gmra.mxu0 %v402
        %v441 = vpop.f32.mrf.mxu0
        %v442 = vadd.f32 %v382, %v441
        %443 = vmatmul.f32.gmra.mxu0 %v404
        %v444 = vpop.f32.mrf.mxu0
        %v445 = vadd.f32 %v387, %v444
        %446 = vdwg.mxu0
        %v447 = vmax.f32 %v424, 0.0
        %v448 = vmax.f32 %v427, 0.0
        %v449 = vmax.f32 %v430, 0.0
        %v450 = vmax.f32 %v433, 0.0
        %v451 = vmax.f32 %v436, 0.0
        %v452 = vmax.f32 %v439, 0.0
        %v453 = vmax.f32 %v442, 0.0
        %v454 = vmax.f32 %v445, 0.0
        %v455 = vld [vmem:[%s3] sm:$0xff]
        %v456 = vld [vmem:[%s3 + $0x8] sm:$0xff]
        %v457 = vld [vmem:[%s3 + $0x10] sm:$0xff]
        %v458 = vld [vmem:[%s3 + $0x18] sm:$0xff]
        %460 = vset.pattern.permute.xlu0 64
        %461 = vperm.xlu0 %460, %v455
        %v462 = vpop.permute.xlu0 %461
        %465 = vset.pattern.permute.xlu0 64
        %466 = vperm.xlu0 %465, %v456
        %v467 = vpop.permute.xlu0 %466
        %470 = vset.pattern.permute.xlu0 64
        %471 = vperm.xlu0 %470, %v457
        %v472 = vpop.permute.xlu0 %471
        %475 = vset.pattern.permute.xlu0 64
        %476 = vperm.xlu0 %475, %v458
        %v477 = vpop.permute.xlu0 %476
        %vm479 = vcmask 523264
        %v480 = vsel %vm479, %v455, 0
        %v482 = vsel %vm479, %v456, 0
        %v484 = vsel %vm479, %v457, 0
        %v486 = vsel %vm479, %v458, 0
        %488 = vmatpush.msra.mxu0 0.0
        %489 = vmatpush.msra.mxu0 0.0
        %490 = vmatpush.msra.mxu0 0.0
        %491 = vmatpush.msra.mxu0 0.0
        %492 = vmatpush.msra.mxu0 0.0
        %493 = vmatpush.msra.mxu0 0.0
        %494 = vmatpush.msra.mxu0 0.0
        %495 = vmatpush.msra.mxu0 0.0
        %496 = vmatpush.msra.mxu0 %v454
        %497 = vmatpush.msra.mxu0 %v453
        %498 = vmatpush.msra.mxu0 %v452
        %499 = vmatpush.msra.mxu0 %v451
        %500 = vmatpush.msra.mxu0 %v450
        %501 = vmatpush.msra.mxu0 %v449
        %502 = vmatpush.msra.mxu0 %v448
        %503 = vmatpush.msra.mxu0 %v447
        %504 = vmatmul.f32.gmra.mxu0 %v480
        %v505 = vpop.f32.mrf.mxu0
        %v506 = vadd.f32 %v462, %v505
        %507 = vmatmul.f32.gmra.mxu0 %v482
        %v508 = vpop.f32.mrf.mxu0
        %v509 = vadd.f32 %v467, %v508
        %510 = vmatmul.f32.gmra.mxu0 %v484
        %v511 = vpop.f32.mrf.mxu0
        %v512 = vadd.f32 %v472, %v511
        %513 = vmatmul.f32.gmra.mxu0 %v486
        %v514 = vpop.f32.mrf.mxu0
        %v515 = vadd.f32 %v477, %v514
        %516 = vdwg.mxu0
        %v517 = vld [vmem:[%s225] sm:$0xff]
        %v518 = vld [vmem:[%s225 + $0x8] sm:$0xff]
        %v519 = vld [vmem:[%s225 + $0x10] sm:$0xff]
        %v520 = vld [vmem:[%s225 + $0x18] sm:$0xff]
        %v521 = vld [vmem:[%s225 + $0x20] sm:$0xff]
        %v522 = vld [vmem:[%s225 + $0x28] sm:$0xff]
        %v523 = vld [vmem:[%s225 + $0x30] sm:$0xff]
        %v524 = vld [vmem:[%s225 + $0x38] sm:$0xff]
        %v525 = vadd.f32 %v517, %v506
        %v526 = vadd.f32 %v518, %v509
        %v527 = vadd.f32 %v519, %v512
        %v528 = vadd.f32 %v520, %v515
        %v529 = vadd.f32 %v521, %v506
        %v530 = vadd.f32 %v522, %v509
        %v531 = vadd.f32 %v523, %v512
        %v532 = vadd.f32 %v524, %v515
        %533 = vst [vmem:[%s256] sm:$0xff] %v525
        %534 = vst [vmem:[%s256 + $0x8] sm:$0xff] %v526
        %535 = vst [vmem:[%s256 + $0x10] sm:$0xff] %v527
        %536 = vst [vmem:[%s256 + $0x18] sm:$0xff] %v528
        %537 = vst [vmem:[%s256 + $0x20] sm:$0xff] %v529
        %538 = vst [vmem:[%s256 + $0x28] sm:$0xff] %v530
        %539 = vst [vmem:[%s256 + $0x30] sm:$0xff] %v531
        %540 = vst [vmem:[%s256 + $0x38] sm:$0xff] %v532
        %s541 = sand.u32 %s145, 1
        %s542 = scalar_lea.sflag [#allocation4], %s541
        %s543 = sand.u32 %s145, 1
        %s544 = smul.addr %s543, 64
        %s545 = scalar_lea.vmem [#allocation5], %s544
        // Predicated region
        $region45: #{tpu_custom_call.1} parent=39 // pred_check
          %p546 = pneg %p155
        $region46: #{tpu_custom_call.1} parent=39 // pred_check_branch
          %548 = sbr.rel (%p546) target = $region48
        $region47: #{tpu_custom_call.1} parent=39 // pred_region
          %550 = vsyncadd %s542, 0
          %s551 = smul.addr %s22, 8
          %s552 = scalar_lea.hbm %s5, %s551
          %s553 = sshll.u32 %s545, 4
          %s554 = int_to_ptr.vmem [resolvable:$true] %s553
          %s555 = sshll.u32 %s552, 4
          %s556 = int_to_ptr.hbm [resolvable:$true] %s555
          %561 = dma.vmem_to_hbm [thread:$0]  %s554, 1024, %s556, %s542, 128, 256, 8
        $region48: #{tpu_custom_call.1} parent=39 // pred_fallthru
          _
      $region40: #{tpu_custom_call.1} parent=5 // pred_fallthru
        _
      %p562 = scmp.le.s32.totalorder 2, %s17
      // Predicated region
      $region49: #{tpu_custom_call.1} parent=5 // pred_check
        %p563 = pneg %p562
      $region50: #{tpu_custom_call.1} parent=5 // pred_check_branch
        %565 = sbr.rel (%p563) target = $region52
      $region51: #{tpu_custom_call.1} parent=5 // pred_region
        %s566 = ssub.s32 %s17, 2
        // Predicated region
        $region53: #{tpu_custom_call.1} parent=51 // pred_check
          %p567 = pneg %p161
        $region54: #{tpu_custom_call.1} parent=51 // pred_check_branch
          %569 = sbr.rel (%p567) target = $region56
        $region55: #{tpu_custom_call.1} parent=51 // pred_region
          %s570 = sand.u32 %s146, 1
          %s571 = scalar_lea.sflag [#allocation4], %s570
          %s572 = sand.u32 %s146, 1
          %s573 = smul.addr %s572, 64
          %s574 = scalar_lea.vmem [#allocation5], %s573
          %576 = dma.done %s571, 1024
        $region56: #{tpu_custom_call.1} parent=51 // pred_fallthru
          _
      $region52: #{tpu_custom_call.1} parent=5 // pred_fallthru
        _
    $region6: #{tpu_custom_call.1} parent=1 // loop_footer
      %s21 = sadd.s32 1, %s17
    $region7: #{tpu_custom_call.1} parent=1 // loop_footer_branch
      %16 = sbr.rel target = $region3
    $region8: #{tpu_custom_call.1} parent=1 // loop_exit
      _
    %577 = vsyncpa [#allocation3], 1
    %s578 = scalar_lea.sflag [#allocation3], 1
    %579 = vsyncpa %s578, 1
    %580 = vsyncpa [#allocation4], 1
    %s581 = scalar_lea.sflag [#allocation4], 1
    %582 = vsyncpa %s581, 1

</llo_original>
